<compile_context>
chip_gen: v6e
topology: v6e:2x2x1
jax: 0.10.0
libtpu: 0.0.40
codegen_flags: <defaults>
</compile_context>

<pallas_src>
import functools

import jax
import jax.numpy as jnp
from jax.experimental import pallas as pl
from jax.experimental.pallas import tpu as pltpu

DROPOUT = 0.2          # unused at eval time (identity)
PROD = False
N_EMBD = 384 if PROD else 64
HIDDEN = 4 * N_EMBD


def _round_up(x, m):
    return ((x + m - 1) // m) * m


def _pick_hidden_chunk(h):
    """Largest MXU-friendly chunk that divides H (prefer 256-multiples for v6e/v7x)."""
    for hk in (512, 256, 384, 128):
        if h % hk == 0:
            return hk
    return h


def _ffwd_kernel(x_ref, w1_ref, b1_ref, w2_ref, b2_ref, o_ref, *, hk, n_chunks):
    # x_ref: (tm, C) activation dtype; w1_ref: (C, H) bf16; b1_ref: (1, H) f32;
    # w2_ref: (H, C) bf16; b2_ref: (1, C) f32; o_ref: (tm, C) activation dtype.
    x = x_ref[...].astype(w1_ref.dtype)            # bf16 only at the MXU boundary
    acc = jnp.zeros(o_ref.shape, jnp.float32)      # (tm, C) f32 accumulator
    # Fused GEMM-ReLU-GEMM over hidden-dim chunks: live intermediate is (tm, hk),
    # never the full (tm, H) f32 tile. Static Python loop -> fully unrolled.
    for j in range(n_chunks):
        sl = pl.ds(j * hk, hk)
        h = jnp.dot(x, w1_ref[:, sl], preferred_element_type=jnp.float32)
        h = jnp.maximum(h + b1_ref[:, sl], 0.0)    # bias + ReLU in f32 on the VPU
        acc = acc + jnp.dot(h.astype(w2_ref.dtype), w2_ref[sl, :],
                            preferred_element_type=jnp.float32)
    # Dropout(p=0.2) in eval mode == identity.
    o_ref[...] = (acc + b2_ref[...]).astype(o_ref.dtype)


def feed_forward(x, w1, b1, w2, b2, *, tm=256, weight_dtype=jnp.bfloat16):
    """x: (B, T, C). Returns (B, T, C) in x.dtype."""
    B, T, C = x.shape
    H = w1.shape[1]
    M = B * T
    out_dtype = x.dtype

    # Row tile: multiple of 8, no larger than the row count; ensure >=2 grid steps
    # when rows allow it so a v7x megacore can split the "parallel" axis.
    tm = max(8, _round_up(min(tm, _round_up(M, 8)), 8))
    if pl.cdiv(M, tm) < 2 and M > 8:
        tm = _round_up(pl.cdiv(M, 2), 8)
    grid = (pl.cdiv(M, tm),)                       # partial last block is fine (row-wise op)

    hk = _pick_hidden_chunk(H)
    n_chunks = H // hk

    # No activation padding / casting in the wrapper: reshape is free, the kernel
    # casts x to bf16 itself. Weights cast once (resident, DMA'd once); biases f32.
    x2d = x.reshape(M, C)
    w1c = w1.astype(weight_dtype)
    w2c = w2.astype(weight_dtype)
    b1r = b1.reshape(1, H).astype(jnp.float32)
    b2r = b2.reshape(1, C).astype(jnp.float32)

    # Rough VMEM budget: single-buffered resident weights/biases, double-buffered
    # streaming tiles, plus in-kernel live values. Raise the limit only if needed.
    wb = jnp.dtype(weight_dtype).itemsize
    est_vmem = (2 * C * H * wb                       # W1 + W2 (single-buffered)
                + (H + C) * 4                        # biases
                + 2 * tm * C * jnp.dtype(x.dtype).itemsize    # x tile (double-buffered)
                + 2 * tm * C * jnp.dtype(out_dtype).itemsize  # out tile (double-buffered)
                + tm * hk * 4 + tm * C * 4 + tm * C * wb)     # h chunk, acc, bf16 x
    vmem_limit = int(est_vmem * 1.5) if est_vmem * 1.5 > (32 << 20) else None

    kernel = functools.partial(_ffwd_kernel, hk=hk, n_chunks=n_chunks)

    out = pl.pallas_call(
        kernel,
        out_shape=jax.ShapeDtypeStruct((M, C), out_dtype),
        grid_spec=pltpu.PrefetchScalarGridSpec(
            num_scalar_prefetch=0,
            grid=grid,
            in_specs=[
                pl.BlockSpec((tm, C), lambda i: (i, 0)),                  # x rows (stream)
                pl.BlockSpec((C, H), lambda i: (0, 0),
                             pipeline_mode=pl.Buffered(1)),               # W1 (resident)
                pl.BlockSpec((1, H), lambda i: (0, 0),
                             pipeline_mode=pl.Buffered(1)),               # b1
                pl.BlockSpec((H, C), lambda i: (0, 0),
                             pipeline_mode=pl.Buffered(1)),               # W2 (resident)
                pl.BlockSpec((1, C), lambda i: (0, 0),
                             pipeline_mode=pl.Buffered(1)),               # b2
            ],
            out_specs=pl.BlockSpec((tm, C), lambda i: (i, 0)),
        ),
        compiler_params=pltpu.CompilerParams(
            dimension_semantics=("parallel",),
            vmem_limit_bytes=vmem_limit),
    )(x2d, w1c, b1r, w2c, b2r)

    return out.reshape(B, T, C)


def init_params(key, n_embd):
    """Deterministic init matching nn.Linear shapes (stored transposed: (in, out))."""
    h = 4 * n_embd
    k1, k2, k3, k4 = jax.random.split(key, 4)
    bound1 = 1.0 / jnp.sqrt(n_embd)
    bound2 = 1.0 / jnp.sqrt(h)
    w1 = jax.random.uniform(k1, (n_embd, h), jnp.float32, -bound1, bound1)
    b1 = jax.random.uniform(k2, (h,), jnp.float32, -bound1, bound1)
    w2 = jax.random.uniform(k3, (h, n_embd), jnp.float32, -bound2, bound2)
    b2 = jax.random.uniform(k4, (n_embd,), jnp.float32, -bound2, bound2)
    return w1, b1, w2, b2


def _ref_ffwd(x, w1, b1, w2, b2):
    """Pure-JAX reference mirroring the kernel's bf16-at-MXU / f32-accumulate pipeline."""
    xb = x.astype(jnp.bfloat16)
    h = jnp.dot(xb, w1.astype(jnp.bfloat16), preferred_element_type=jnp.float32) + b1
    h = jnp.maximum(h, 0.0)
    y = jnp.dot(h.astype(jnp.bfloat16), w2.astype(jnp.bfloat16),
                preferred_element_type=jnp.float32) + b2
    return y


if __name__ == "__main__":
    key = jax.random.PRNGKey(0)
    kx, kp = jax.random.split(key)

    B, T, C = 2, 8, N_EMBD
    x = jax.random.normal(kx, (B, T, C), jnp.float32)
    w1, b1, w2, b2 = init_params(kp, C)

    y = feed_forward(x, w1, b1, w2, b2)
    y = jax.block_until_ready(y)
    assert y.shape == (B, T, C)
    assert y.dtype == x.dtype

    # Primary check: dtype-mirrored JAX reference (tight tolerance).
    ref_bf16 = _ref_ffwd(x, w1, b1, w2, b2)
    assert jnp.allclose(y, ref_bf16, atol=1e-2, rtol=1e-2)
    # Secondary check: full-f32 reference (loose; accounts for bf16 MXU feeds).
    ref_f32 = jnp.maximum(x @ w1 + b1, 0.0) @ w2 + b2
    assert jnp.allclose(y, ref_f32, atol=5e-2, rtol=5e-2)

    print("KERNEL_OK")
</pallas_src>

<mosaic_0001>
module attributes {stable_mosaic.version = 11 : i64} {
  func.func @_ffwd_kernel(%arg0: i32, %arg1: memref<8x64xf32, #tpu.memory_space<vmem>>, %arg2: memref<64x256xbf16, #tpu.memory_space<vmem>>, %arg3: memref<1x256xf32, #tpu.memory_space<vmem>>, %arg4: memref<256x64xbf16, #tpu.memory_space<vmem>>, %arg5: memref<1x64xf32, #tpu.memory_space<vmem>>, %arg6: memref<8x64xf32, #tpu.memory_space<vmem>>) attributes {dimension_semantics = [#tpu.dimension_semantics<parallel>], iteration_bounds = array<i64: 2>, scalar_prefetch = 0 : i64, scratch_operands = 0 : i64, tpu.core_type = #tpu.core_type<tc>, window_params = [{transform_indices = @transform_0, window_bounds = array<i64: 8, 64>}, {pipeline_mode = #tpu.pipeline_mode<synchronous>, transform_indices = @transform_1, window_bounds = array<i64: 64, 256>}, {pipeline_mode = #tpu.pipeline_mode<synchronous>, transform_indices = @transform_2, window_bounds = array<i64: 1, 256>}, {pipeline_mode = #tpu.pipeline_mode<synchronous>, transform_indices = @transform_3, window_bounds = array<i64: 256, 64>}, {pipeline_mode = #tpu.pipeline_mode<synchronous>, transform_indices = @transform_4, window_bounds = array<i64: 1, 64>}, {transform_indices = @transform_5, window_bounds = array<i64: 8, 64>}]} {
    %c0 = arith.constant 0 : index
    %c0_0 = arith.constant 0 : index
    %0 = vector.load %arg1[%c0, %c0_0] : memref<8x64xf32, #tpu.memory_space<vmem>>, vector<8x64xf32>
    %1 = arith.truncf %0 : vector<8x64xf32> to vector<8x64xbf16>
    %cst = arith.constant 0.000000e+00 : f32
    %2 = vector.broadcast %cst : f32 to vector<8x64xf32>
    %c0_1 = arith.constant 0 : index
    %c0_2 = arith.constant 0 : index
    %3 = vector.load %arg2[%c0_1, %c0_2] : memref<64x256xbf16, #tpu.memory_space<vmem>>, vector<64x256xbf16>
    %cst_3 = arith.constant dense<0.000000e+00> : vector<8x256xf32>
    %4 = tpu.matmul %1, %3, %cst_3 {dimension_numbers = #tpu.dot_dimension_numbers<[1], [0], [0], [1], [0, 0, 1, 1], [], []>} : vector<8x64xbf16>, vector<64x256xbf16>, vector<8x256xf32> -> vector<8x256xf32>
    %c0_4 = arith.constant 0 : index
    %c0_5 = arith.constant 0 : index
    %5 = vector.load %arg3[%c0_4, %c0_5] : memref<1x256xf32, #tpu.memory_space<vmem>>, vector<1x256xf32>
    %6 = vector.broadcast %5 : vector<1x256xf32> to vector<8x256xf32>
    %7 = arith.addf %4, %6 : vector<8x256xf32>
    %cst_6 = arith.constant 0.000000e+00 : f32
    %8 = vector.broadcast %cst_6 : f32 to vector<8x256xf32>
    %9 = arith.maximumf %7, %8 : vector<8x256xf32>
    %10 = arith.truncf %9 : vector<8x256xf32> to vector<8x256xbf16>
    %c0_7 = arith.constant 0 : index
    %c0_8 = arith.constant 0 : index
    %11 = vector.load %arg4[%c0_7, %c0_8] : memref<256x64xbf16, #tpu.memory_space<vmem>>, vector<256x64xbf16>
    %cst_9 = arith.constant dense<0.000000e+00> : vector<8x64xf32>
    %12 = tpu.matmul %10, %11, %cst_9 {dimension_numbers = #tpu.dot_dimension_numbers<[1], [0], [0], [1], [0, 0, 1, 1], [], []>} : vector<8x256xbf16>, vector<256x64xbf16>, vector<8x64xf32> -> vector<8x64xf32>
    %13 = arith.addf %2, %12 : vector<8x64xf32>
    %c0_10 = arith.constant 0 : index
    %c0_11 = arith.constant 0 : index
    %14 = vector.load %arg5[%c0_10, %c0_11] : memref<1x64xf32, #tpu.memory_space<vmem>>, vector<1x64xf32>
    %15 = vector.broadcast %14 : vector<1x64xf32> to vector<8x64xf32>
    %16 = arith.addf %13, %15 : vector<8x64xf32>
    %c0_12 = arith.constant 0 : index
    %c0_13 = arith.constant 0 : index
    %17 = vector.load %arg6[%c0_12, %c0_13] : memref<8x64xf32, #tpu.memory_space<vmem>>, vector<8x64xf32>
    tpu.vector_store %arg6[%c0_12, %c0_13], %16 {strides = array<i32>} : memref<8x64xf32, #tpu.memory_space<vmem>>, vector<8x64xf32>,
    return
  }
  func.func @transform_0(%arg0: i32) -> (i32, i32) {
    %c0_i32 = arith.constant 0 : i32
    %c0_i32_0 = arith.constant 0 : i32
    return %arg0, %c0_i32 : i32, i32
  }
  func.func @transform_1(%arg0: i32) -> (i32, i32) {
    %c0_i32 = arith.constant 0 : i32
    %c0_i32_0 = arith.constant 0 : i32
    %c0_i32_1 = arith.constant 0 : i32
    return %c0_i32, %c0_i32_0 : i32, i32
  }
  func.func @transform_2(%arg0: i32) -> (i32, i32) {
    %c0_i32 = arith.constant 0 : i32
    %c0_i32_0 = arith.constant 0 : i32
    %c0_i32_1 = arith.constant 0 : i32
    return %c0_i32, %c0_i32_0 : i32, i32
  }
  func.func @transform_3(%arg0: i32) -> (i32, i32) {
    %c0_i32 = arith.constant 0 : i32
    %c0_i32_0 = arith.constant 0 : i32
    %c0_i32_1 = arith.constant 0 : i32
    return %c0_i32, %c0_i32_0 : i32, i32
  }
  func.func @transform_4(%arg0: i32) -> (i32, i32) {
    %c0_i32 = arith.constant 0 : i32
    %c0_i32_0 = arith.constant 0 : i32
    %c0_i32_1 = arith.constant 0 : i32
    return %c0_i32, %c0_i32_0 : i32, i32
  }
  func.func @transform_5(%arg0: i32) -> (i32, i32) {
    %c0_i32 = arith.constant 0 : i32
    %c0_i32_0 = arith.constant 0 : i32
    return %arg0, %c0_i32 : i32, i32
  }
}

</mosaic_0001>

<llo_original>
// kernel: tpu_custom_call.1
$region0: #{tpu_custom_call.1}
  #allocation0 [shape = 'u32[]', space=smem, size = 0x4, offset = 0x4, fixed_abs, tag = 'smem constant byte address 0x4 - core index']
  #allocation1 [shape = 'u32[144,128]{1,0:T(1,128)}', space=vmem, size = 0x12000, scoped, tag = 'internal scratch']
  %s0 = inlined_call_operand.vmem [shape: f32[16,64], index: 0, kind: input, shape index: {}]
  %s1 = inlined_call_operand.vmem [shape: bf16[64,256], index: 1, kind: input, shape index: {}]
  %s2 = inlined_call_operand.vmem [shape: f32[1,256], index: 2, kind: input, shape index: {}]
  %s3 = inlined_call_operand.vmem [shape: bf16[256,64], index: 3, kind: input, shape index: {}]
  %s4 = inlined_call_operand.vmem [shape: f32[1,64], index: 4, kind: input, shape index: {}]
  %s5 = inlined_call_operand.hbm [shape: f32[16,64], index: 5, kind: output, shape index: {}]
  %s6 = sld [smem:[#allocation0]]
  $region53: #{tpu_custom_call.1} parent=0
    _
  %s8 = ssub.s32 1, %s6
  %s9 = scalar_select 0, %s8, %s6
  $region1: #{tpu_custom_call.1} parent=0
    #allocation2 [shape = 'u8[8192]{0}', space=vmem, size = 0x2000, scoped, tag = 'output window, operand 0']
    #allocation3 [shape = 's32[2]{0}', space=sflag, size = 0x8, scoped, tag = 'scoped memory for tpu_custom_call.1']
    %10 = vsyncpa [#allocation3], 0
    %s11 = scalar_lea.sflag [#allocation3], 1
    %12 = vsyncpa %s11, 0
    loop: start=0, step=1, limit=4
    $region2: #{tpu_custom_call.1} parent=1 // loop_pre_header
      _
    $region3: #{tpu_custom_call.1} parent=1 // loop_header
      %s14 = sphi 0, %s18
      %p15 = scmp.ge.s32.totalorder %s14, 4
      %s24 = sphi 0, %s26
      %s27 = sphi 0, %s24
      %s28 = sphi 0, %s27
      %s44 = sphi 0, %s28
      %s48 = sphi 0, %s48
      %s50 = sphi 0, %s48
      %s51 = sphi 0, %s50
      %s65 = sphi 0, %s51
      %s69 = sphi 0, %s69
      %s71 = sphi 0, %s69
      %s72 = sphi 0, %s71
      %s86 = sphi 0, %s72
      %s90 = sphi 0, %s90
      %s92 = sphi 0, %s90
      %s93 = sphi 0, %s92
      %s107 = sphi 0, %s93
      %s111 = sphi 0, %s111
      %s113 = sphi 0, %s111
      %s114 = sphi 0, %s113
      %s128 = sphi 0, %s114
      %s134 = sphi 0, %s136
      %s137 = sphi 0, %s134
      %s138 = sphi 0, %s137
      %s154 = sphi 0, %s138
    $region4: #{tpu_custom_call.1} parent=1 // loop_header_branch
      %17 = sbr.rel (%p15) target = $region8
    $region5: #{tpu_custom_call.1} parent=1 // loop_body
      %s19 = ssub.s32 %s14, 1
      %s20 = ssub.s32 %s14, 2
      %s21 = sadd.s32 %s14, 1
      %s22 = ssub.s32 %s14, %s21
      %p23 = scmp.eq.s32.totalorder %s22, 0
      %s25 = sadd.s32 %s24, 1
      %s26 = scalar_select %p23, %s24, %s25
      %p29 = pneg %p23
      %p30 = scmp.eq.s32.totalorder %s14, 1
      %p31 = por %p29, %p30
      %p32 = scmp.ne.s32.totalorder %s24, %s27
      %p33 = scmp.eq.s32.totalorder %s14, 0
      %p34 = por %p32, %p33
      %p35 = scmp.ne.s32.totalorder %s24, %s27
      %p36 = scmp.eq.s32.totalorder %s19, 1
      %p37 = por %p35, %p36
      %p38 = scmp.ne.s32.totalorder %s27, %s28
      %p39 = scmp.eq.s32.totalorder %s19, 0
      %p40 = por %p38, %p39
      %p41 = scmp.ne.s32.totalorder %s27, %s28
      %p42 = scmp.eq.s32.totalorder %s20, 1
      %p43 = por %p41, %p42
      %p45 = scmp.ne.s32.totalorder %s28, %s44
      %p46 = scmp.eq.s32.totalorder %s20, 0
      %p47 = por %p45, %p46
      %s49 = sadd.s32 %s48, 1
      %p52 = scmp.eq.s32.totalorder %s14, 1
      %p53 = scmp.ne.s32.totalorder %s48, %s50
      %p54 = scmp.eq.s32.totalorder %s14, 0
      %p55 = por %p53, %p54
      %p56 = scmp.ne.s32.totalorder %s48, %s50
      %p57 = scmp.eq.s32.totalorder %s19, 1
      %p58 = por %p56, %p57
      %p59 = scmp.ne.s32.totalorder %s50, %s51
      %p60 = scmp.eq.s32.totalorder %s19, 0
      %p61 = por %p59, %p60
      %p62 = scmp.ne.s32.totalorder %s50, %s51
      %p63 = scmp.eq.s32.totalorder %s20, 1
      %p64 = por %p62, %p63
      %p66 = scmp.ne.s32.totalorder %s51, %s65
      %p67 = scmp.eq.s32.totalorder %s20, 0
      %p68 = por %p66, %p67
      %s70 = sadd.s32 %s69, 1
      %p73 = scmp.eq.s32.totalorder %s14, 1
      %p74 = scmp.ne.s32.totalorder %s69, %s71
      %p75 = scmp.eq.s32.totalorder %s14, 0
      %p76 = por %p74, %p75
      %p77 = scmp.ne.s32.totalorder %s69, %s71
      %p78 = scmp.eq.s32.totalorder %s19, 1
      %p79 = por %p77, %p78
      %p80 = scmp.ne.s32.totalorder %s71, %s72
      %p81 = scmp.eq.s32.totalorder %s19, 0
      %p82 = por %p80, %p81
      %p83 = scmp.ne.s32.totalorder %s71, %s72
      %p84 = scmp.eq.s32.totalorder %s20, 1
      %p85 = por %p83, %p84
      %p87 = scmp.ne.s32.totalorder %s72, %s86
      %p88 = scmp.eq.s32.totalorder %s20, 0
      %p89 = por %p87, %p88
      %s91 = sadd.s32 %s90, 1
      %p94 = scmp.eq.s32.totalorder %s14, 1
      %p95 = scmp.ne.s32.totalorder %s90, %s92
      %p96 = scmp.eq.s32.totalorder %s14, 0
      %p97 = por %p95, %p96
      %p98 = scmp.ne.s32.totalorder %s90, %s92
      %p99 = scmp.eq.s32.totalorder %s19, 1
      %p100 = por %p98, %p99
      %p101 = scmp.ne.s32.totalorder %s92, %s93
      %p102 = scmp.eq.s32.totalorder %s19, 0
      %p103 = por %p101, %p102
      %p104 = scmp.ne.s32.totalorder %s92, %s93
      %p105 = scmp.eq.s32.totalorder %s20, 1
      %p106 = por %p104, %p105
      %p108 = scmp.ne.s32.totalorder %s93, %s107
      %p109 = scmp.eq.s32.totalorder %s20, 0
      %p110 = por %p108, %p109
      %s112 = sadd.s32 %s111, 1
      %p115 = scmp.eq.s32.totalorder %s14, 1
      %p116 = scmp.ne.s32.totalorder %s111, %s113
      %p117 = scmp.eq.s32.totalorder %s14, 0
      %p118 = por %p116, %p117
      %p119 = scmp.ne.s32.totalorder %s111, %s113
      %p120 = scmp.eq.s32.totalorder %s19, 1
      %p121 = por %p119, %p120
      %p122 = scmp.ne.s32.totalorder %s113, %s114
      %p123 = scmp.eq.s32.totalorder %s19, 0
      %p124 = por %p122, %p123
      %p125 = scmp.ne.s32.totalorder %s113, %s114
      %p126 = scmp.eq.s32.totalorder %s20, 1
      %p127 = por %p125, %p126
      %p129 = scmp.ne.s32.totalorder %s114, %s128
      %p130 = scmp.eq.s32.totalorder %s20, 0
      %p131 = por %p129, %p130
      %s132 = ssub.s32 %s14, %s21
      %p133 = scmp.eq.s32.totalorder %s132, 0
      %s135 = sadd.s32 %s134, 1
      %s136 = scalar_select %p133, %s134, %s135
      %p139 = pneg %p133
      %p140 = scmp.eq.s32.totalorder %s14, 1
      %p141 = por %p139, %p140
      %p142 = scmp.ne.s32.totalorder %s134, %s137
      %p143 = scmp.eq.s32.totalorder %s14, 0
      %p144 = por %p142, %p143
      %p145 = scmp.ne.s32.totalorder %s134, %s137
      %p146 = scmp.eq.s32.totalorder %s19, 1
      %p147 = por %p145, %p146
      %p148 = scmp.ne.s32.totalorder %s137, %s138
      %p149 = scmp.eq.s32.totalorder %s19, 0
      %p150 = por %p148, %p149
      %p151 = scmp.ne.s32.totalorder %s137, %s138
      %p152 = scmp.eq.s32.totalorder %s20, 1
      %p153 = por %p151, %p152
      %p155 = scmp.ne.s32.totalorder %s138, %s154
      %p156 = scmp.eq.s32.totalorder %s20, 0
      %p157 = por %p155, %p156
      %p158 = scmp.le.s32.totalorder 1, %s14
      %p159 = scmp.lt.s32.totalorder %s14, 3
      %p160 = pnand %p158, %p159
      %p161 = pneg %p160
      // Predicated region
      $region9: #{tpu_custom_call.1} parent=5 // pred_check
        _
      $region10: #{tpu_custom_call.1} parent=5 // pred_check_branch
        %163 = sbr.rel (%p160) target = $region12
      $region11: #{tpu_custom_call.1} parent=5 // pred_region
        %s164 = ssub.s32 %s14, 1
        // Predicated region
        $region13: #{tpu_custom_call.1} parent=11 // pred_check
          %p165 = pneg %p61
        $region14: #{tpu_custom_call.1} parent=11 // pred_check_branch
          %167 = sbr.rel (%p165) target = $region16
        $region15: #{tpu_custom_call.1} parent=11 // pred_region
          _
        $region16: #{tpu_custom_call.1} parent=11 // pred_fallthru
          _
        // Predicated region
        $region17: #{tpu_custom_call.1} parent=11 // pred_check
          %p168 = pneg %p82
        $region18: #{tpu_custom_call.1} parent=11 // pred_check_branch
          %170 = sbr.rel (%p168) target = $region20
        $region19: #{tpu_custom_call.1} parent=11 // pred_region
          _
        $region20: #{tpu_custom_call.1} parent=11 // pred_fallthru
          _
        // Predicated region
        $region21: #{tpu_custom_call.1} parent=11 // pred_check
          %p171 = pneg %p103
        $region22: #{tpu_custom_call.1} parent=11 // pred_check_branch
          %173 = sbr.rel (%p171) target = $region24
        $region23: #{tpu_custom_call.1} parent=11 // pred_region
          _
        $region24: #{tpu_custom_call.1} parent=11 // pred_fallthru
          _
        // Predicated region
        $region25: #{tpu_custom_call.1} parent=11 // pred_check
          %p174 = pneg %p124
        $region26: #{tpu_custom_call.1} parent=11 // pred_check_branch
          %176 = sbr.rel (%p174) target = $region28
        $region27: #{tpu_custom_call.1} parent=11 // pred_region
          _
        $region28: #{tpu_custom_call.1} parent=11 // pred_fallthru
          _
      $region12: #{tpu_custom_call.1} parent=5 // pred_fallthru
        _
      %p177 = scmp.lt.s32.totalorder %s14, 2
      // Predicated region
      $region29: #{tpu_custom_call.1} parent=5 // pred_check
        %p178 = pneg %p177
      $region30: #{tpu_custom_call.1} parent=5 // pred_check_branch
        %180 = sbr.rel (%p178) target = $region32
      $region31: #{tpu_custom_call.1} parent=5 // pred_region
        // Predicated region
        $region33: #{tpu_custom_call.1} parent=31 // pred_check
          %p181 = pneg %p34
        $region34: #{tpu_custom_call.1} parent=31 // pred_check_branch
          %183 = sbr.rel (%p181) target = $region36
        $region35: #{tpu_custom_call.1} parent=31 // pred_region
          %p184 = scmp.lt.s32.totalorder %s14, 1
          %s185 = scalar_select %p184, %s14, 1
          %s186 = smul.addr %s185, 8
          %s187 = scalar_lea.vmem %s0, %s186
        $region36: #{tpu_custom_call.1} parent=31 // pred_fallthru
          _
      $region32: #{tpu_custom_call.1} parent=5 // pred_fallthru
        _
      %p188 = scmp.le.s32.totalorder 1, %s14
      %p189 = scmp.lt.s32.totalorder %s14, 3
      %p190 = pnand %p188, %p189
      %p191 = pneg %p190
      // Predicated region
      $region37: #{tpu_custom_call.1} parent=5 // pred_check
        _
      $region38: #{tpu_custom_call.1} parent=5 // pred_check_branch
        %193 = sbr.rel (%p190) target = $region40
      $region39: #{tpu_custom_call.1} parent=5 // pred_region
        %s194 = ssub.s32 %s14, 1
        %p195 = scmp.lt.s32.totalorder %s19, 1
        %s196 = scalar_select %p195, %s19, 1
        %s197 = smul.addr %s196, 8
        %s198 = scalar_lea.vmem %s0, %s197
        %p199 = pneg %p40
        %p200 = pneg %p37
        %p201 = pneg %p61
        %p202 = pneg %p58
        %p203 = pneg %p82
        %p204 = pneg %p79
        %p205 = pneg %p103
        %p206 = pneg %p100
        %p207 = pneg %p124
        %p208 = pneg %p121
        %p209 = pneg %p150
        %p210 = pneg %p147
        %s211 = sand.u32 %s137, 1
        %s212 = scalar_lea.sflag [#allocation3], %s211
        %s213 = sand.u32 %s137, 1
        %s214 = smul.addr %s213, 8
        %s215 = scalar_lea.vmem [#allocation2], %s214
        %p216 = scmp.lt.s32.totalorder %s19, 1
        %s217 = scalar_select %p216, %s19, 1
        %s218 = smul.addr %s217, 8
        %s219 = scalar_lea.vmem %s0, %s218
        %v221 = vld [vmem:[%s219] sm:$0xff]
        %v222 = vpack.c.bf16 %v221, %v221
        %v223 = vld [vmem:[%s1] sm:$0xff]
        %v224 = vld [vmem:[%s1 + $0x8] sm:$0xff]
        %v225 = vld [vmem:[%s1 + $0x10] sm:$0xff]
        %v226 = vld [vmem:[%s1 + $0x18] sm:$0xff]
        %v227 = vld [vmem:[%s1 + $0x20] sm:$0xff]
        %v228 = vld [vmem:[%s1 + $0x28] sm:$0xff]
        %v229 = vld [vmem:[%s1 + $0x30] sm:$0xff]
        %v230 = vld [vmem:[%s1 + $0x38] sm:$0xff]
        %v231 = vld [vmem:[%s2] sm:$0x3]
        %v233 = vlaneseq
        %v234 = vshrl.u32 %v233, 7
        %v235 = vsub.s32 0, %v234
        %v236 = vrot.slane %v231, %v235
        %v237 = vlaneseq
        %v238 = vshrl.u32 %v237, 7
        %v239 = vsub.s32 1, %v238
        %v240 = vrot.slane %v231, %v239
        %v251 = vunpack.c.l.b16 %v223
        %v252 = vunpack.c.h.b16 %v223
        %v253 = vunpack.c.l.b16 %v224
        %v254 = vunpack.c.h.b16 %v224
        %v255 = vunpack.c.l.b16 %v225
        %v256 = vunpack.c.h.b16 %v225
        %v257 = vunpack.c.l.b16 %v226
        %v258 = vunpack.c.h.b16 %v226
        %v259 = vunpack.c.l.b16 %v227
        %v260 = vunpack.c.h.b16 %v227
        %v261 = vunpack.c.l.b16 %v228
        %v262 = vunpack.c.h.b16 %v228
        %v263 = vunpack.c.l.b16 %v229
        %v264 = vunpack.c.h.b16 %v229
        %v265 = vunpack.c.l.b16 %v230
        %v266 = vunpack.c.h.b16 %v230
        %v267 = vpack.c.b16 %v253, %v251
        %v268 = vpack.c.b16 %v254, %v252
        %v269 = vpack.c.b16 %v257, %v255
        %v270 = vpack.c.b16 %v258, %v256
        %v271 = vpack.c.b16 %v261, %v259
        %v272 = vpack.c.b16 %v262, %v260
        %v273 = vpack.c.b16 %v265, %v263
        %v274 = vpack.c.b16 %v266, %v264
        %vm283 = vcmask 523264
        %v285 = vsel %vm283, %v222, 0
        %287 = vmatprep.subr.bf16.mxu0 0
        %288 = vmatpush1.bf16.msra.mxu0 0
        %289 = vmatprep.subr.bf16.mxu0 0
        %290 = vmatpush1.bf16.msra.mxu0 0
        %291 = vmatprep.subr.bf16.mxu0 0
        %292 = vmatpush1.bf16.msra.mxu0 0
        %293 = vmatprep.subr.bf16.mxu0 0
        %294 = vmatpush1.bf16.msra.mxu0 0
        %295 = vmatprep.subr.bf16.mxu0 %v274
        %296 = vmatpush1.bf16.msra.mxu0 %v273
        %297 = vmatprep.subr.bf16.mxu0 %v272
        %298 = vmatpush1.bf16.msra.mxu0 %v271
        %299 = vmatprep.subr.bf16.mxu0 %v270
        %300 = vmatpush1.bf16.msra.mxu0 %v269
        %301 = vmatprep.subr.bf16.mxu0 %v268
        %302 = vmatpush1.bf16.msra.mxu0 %v267
        %303 = vmatprep.subr.bf16.mxu0 0
        %304 = vmatpush2.bf16.msra.mxu0 0
        %305 = vmatprep.subr.bf16.mxu0 0
        %306 = vmatpush2.bf16.msra.mxu0 0
        %307 = vmatprep.subr.bf16.mxu0 0
        %308 = vmatpush2.bf16.msra.mxu0 0
        %309 = vmatprep.subr.bf16.mxu0 0
        %310 = vmatpush2.bf16.msra.mxu0 0
        %311 = vmatprep.subr.bf16.mxu0 0
        %312 = vmatpush2.bf16.msra.mxu0 0
        %313 = vmatprep.subr.bf16.mxu0 0
        %314 = vmatpush2.bf16.msra.mxu0 0
        %315 = vmatprep.subr.bf16.mxu0 0
        %316 = vmatpush2.bf16.msra.mxu0 0
        %317 = vmatprep.subr.bf16.mxu0 0
        %318 = vmatpush2.bf16.msra.mxu0 0
        %319 = vmatprep.mubr.bf16.mxu0 0
        %320 = vmatmul.mubr.bf16.gmra.mxu0 %v285
        %v321 = vpop.f32.mrf.mxu0
        %v322 = vadd.f32 %v236, %v321
        %v323 = vpop.f32.mrf.mxu0
        %v324 = vadd.f32 %v240, %v323
        %v325 = vpop.f32.mrf.mxu0
        %v326 = vpop.f32.mrf.mxu0
        %327 = vdwg.mxu0
        %v328 = vmax.f32 %v322, 0.0
        %v329 = vmax.f32 %v324, 0.0
        %v330 = vpack.c.bf16 %v328, %v328
        %v331 = vpack.c.bf16 %v329, %v329
        %v332 = vld [vmem:[%s3] sm:$0xf]
        %v333 = vld [vmem:[%s3 + $0x4] sm:$0xf]
        %v334 = vld [vmem:[%s3 + $0x8] sm:$0xf]
        %v335 = vld [vmem:[%s3 + $0xc] sm:$0xf]
        %v336 = vld [vmem:[%s3 + $0x10] sm:$0xf]
        %v337 = vld [vmem:[%s3 + $0x14] sm:$0xf]
        %v338 = vld [vmem:[%s3 + $0x18] sm:$0xf]
        %v339 = vld [vmem:[%s3 + $0x1c] sm:$0xf]
        %v340 = vld [vmem:[%s3 + $0x20] sm:$0xf]
        %v341 = vld [vmem:[%s3 + $0x24] sm:$0xf]
        %v342 = vld [vmem:[%s3 + $0x28] sm:$0xf]
        %v343 = vld [vmem:[%s3 + $0x2c] sm:$0xf]
        %v344 = vld [vmem:[%s3 + $0x30] sm:$0xf]
        %v345 = vld [vmem:[%s3 + $0x34] sm:$0xf]
        %v346 = vld [vmem:[%s3 + $0x38] sm:$0xf]
        %v347 = vld [vmem:[%s3 + $0x3c] sm:$0xf]
        %v348 = vld [vmem:[%s3 + $0x40] sm:$0xf]
        %v349 = vld [vmem:[%s3 + $0x44] sm:$0xf]
        %v350 = vld [vmem:[%s3 + $0x48] sm:$0xf]
        %v351 = vld [vmem:[%s3 + $0x4c] sm:$0xf]
        %v352 = vld [vmem:[%s3 + $0x50] sm:$0xf]
        %v353 = vld [vmem:[%s3 + $0x54] sm:$0xf]
        %v354 = vld [vmem:[%s3 + $0x58] sm:$0xf]
        %v355 = vld [vmem:[%s3 + $0x5c] sm:$0xf]
        %v356 = vld [vmem:[%s3 + $0x60] sm:$0xf]
        %v357 = vld [vmem:[%s3 + $0x64] sm:$0xf]
        %v358 = vld [vmem:[%s3 + $0x68] sm:$0xf]
        %v359 = vld [vmem:[%s3 + $0x6c] sm:$0xf]
        %v360 = vld [vmem:[%s3 + $0x70] sm:$0xf]
        %v361 = vld [vmem:[%s3 + $0x74] sm:$0xf]
        %v362 = vld [vmem:[%s3 + $0x78] sm:$0xf]
        %v363 = vld [vmem:[%s3 + $0x7c] sm:$0xf]
        %v364 = vld [vmem:[%s4] sm:$0x1]
        %v366 = vlaneseq
        %v367 = vshrl.u32 %v366, 7
        %v368 = vsub.s32 0, %v367
        %v369 = vrot.slane %v364, %v368
        %v403 = vunpack.c.l.b16 %v332
        %v404 = vunpack.c.l.b16 %v333
        %v405 = vunpack.c.l.b16 %v334
        %v406 = vunpack.c.l.b16 %v335
        %v407 = vunpack.c.l.b16 %v336
        %v408 = vunpack.c.l.b16 %v337
        %v409 = vunpack.c.l.b16 %v338
        %v410 = vunpack.c.l.b16 %v339
        %v411 = vunpack.c.l.b16 %v340
        %v412 = vunpack.c.l.b16 %v341
        %v413 = vunpack.c.l.b16 %v342
        %v414 = vunpack.c.l.b16 %v343
        %v415 = vunpack.c.l.b16 %v344
        %v416 = vunpack.c.l.b16 %v345
        %v417 = vunpack.c.l.b16 %v346
        %v418 = vunpack.c.l.b16 %v347
        %v419 = vunpack.c.l.b16 %v348
        %v420 = vunpack.c.l.b16 %v349
        %v421 = vunpack.c.l.b16 %v350
        %v422 = vunpack.c.l.b16 %v351
        %v423 = vunpack.c.l.b16 %v352
        %v424 = vunpack.c.l.b16 %v353
        %v425 = vunpack.c.l.b16 %v354
        %v426 = vunpack.c.l.b16 %v355
        %v427 = vunpack.c.l.b16 %v356
        %v428 = vunpack.c.l.b16 %v357
        %v429 = vunpack.c.l.b16 %v358
        %v430 = vunpack.c.l.b16 %v359
        %v431 = vunpack.c.l.b16 %v360
        %v432 = vunpack.c.l.b16 %v361
        %v433 = vunpack.c.l.b16 %v362
        %v434 = vunpack.c.l.b16 %v363
        %v435 = vpack.c.b16 %v404, %v403
        %v436 = vpack.c.b16 %v406, %v405
        %v437 = vpack.c.b16 %v408, %v407
        %v438 = vpack.c.b16 %v410, %v409
        %v439 = vpack.c.b16 %v412, %v411
        %v440 = vpack.c.b16 %v414, %v413
        %v441 = vpack.c.b16 %v416, %v415
        %v442 = vpack.c.b16 %v418, %v417
        %v443 = vpack.c.b16 %v420, %v419
        %v444 = vpack.c.b16 %v422, %v421
        %v445 = vpack.c.b16 %v424, %v423
        %v446 = vpack.c.b16 %v426, %v425
        %v447 = vpack.c.b16 %v428, %v427
        %v448 = vpack.c.b16 %v430, %v429
        %v449 = vpack.c.b16 %v432, %v431
        %v450 = vpack.c.b16 %v434, %v433
        %467 = vmatprep.subr.bf16.mxu0 0
        %468 = vmatpush1.bf16.msra.mxu0 %v442
        %469 = vmatprep.subr.bf16.mxu0 0
        %470 = vmatpush1.bf16.msra.mxu0 %v441
        %471 = vmatprep.subr.bf16.mxu0 0
        %472 = vmatpush1.bf16.msra.mxu0 %v440
        %473 = vmatprep.subr.bf16.mxu0 0
        %474 = vmatpush1.bf16.msra.mxu0 %v439
        %475 = vmatprep.subr.bf16.mxu0 0
        %476 = vmatpush1.bf16.msra.mxu0 %v438
        %477 = vmatprep.subr.bf16.mxu0 0
        %478 = vmatpush1.bf16.msra.mxu0 %v437
        %479 = vmatprep.subr.bf16.mxu0 0
        %480 = vmatpush1.bf16.msra.mxu0 %v436
        %481 = vmatprep.subr.bf16.mxu0 0
        %482 = vmatpush1.bf16.msra.mxu0 %v435
        %483 = vmatprep.subr.bf16.mxu0 0
        %484 = vmatpush2.bf16.msra.mxu0 %v450
        %485 = vmatprep.subr.bf16.mxu0 0
        %486 = vmatpush2.bf16.msra.mxu0 %v449
        %487 = vmatprep.subr.bf16.mxu0 0
        %488 = vmatpush2.bf16.msra.mxu0 %v448
        %489 = vmatprep.subr.bf16.mxu0 0
        %490 = vmatpush2.bf16.msra.mxu0 %v447
        %491 = vmatprep.subr.bf16.mxu0 0
        %492 = vmatpush2.bf16.msra.mxu0 %v446
        %493 = vmatprep.subr.bf16.mxu0 0
        %494 = vmatpush2.bf16.msra.mxu0 %v445
        %495 = vmatprep.subr.bf16.mxu0 0
        %496 = vmatpush2.bf16.msra.mxu0 %v444
        %497 = vmatprep.subr.bf16.mxu0 0
        %498 = vmatpush2.bf16.msra.mxu0 %v443
        %499 = vmatprep.mubr.bf16.mxu0 %v331
        %500 = vmatmul.mubr.bf16.gmra.mxu0 %v330
        %v501 = vpop.f32.mrf.mxu0
        %v502 = vadd.f32 %v369, %v501
        %v503 = vpop.f32.mrf.mxu0
        %v504 = vpop.f32.mrf.mxu0
        %v505 = vpop.f32.mrf.mxu0
        %506 = vdwg.mxu0
        %507 = vst.msk [vmem:[%s215] sm:$0xff] %vm283, %v502
        %s508 = sand.u32 %s137, 1
        %s509 = scalar_lea.sflag [#allocation3], %s508
        %s510 = sand.u32 %s137, 1
        %s511 = smul.addr %s510, 8
        %s512 = scalar_lea.vmem [#allocation2], %s511
        // Predicated region
        $region41: #{tpu_custom_call.1} parent=39 // pred_check
          %p513 = pneg %p147
        $region42: #{tpu_custom_call.1} parent=39 // pred_check_branch
          %515 = sbr.rel (%p513) target = $region44
        $region43: #{tpu_custom_call.1} parent=39 // pred_region
          %s517 = ssub.s32 128, 128
          %518 = vsyncadd %s509, %s517
          %s519 = smul.addr %s19, 128
          %s520 = scalar_lea.hbm %s5, %s519
          %s522 = sshll.u32 %s512, 4
          %s523 = int_to_ptr.vmem [resolvable:$true] %s522
          %525 = dma.vmem_to_hbm [thread:$0]  %s523, 128, %s520, %s509
        $region44: #{tpu_custom_call.1} parent=39 // pred_fallthru
          _
      $region40: #{tpu_custom_call.1} parent=5 // pred_fallthru
        _
      %p526 = scmp.le.s32.totalorder 2, %s14
      // Predicated region
      $region45: #{tpu_custom_call.1} parent=5 // pred_check
        %p527 = pneg %p526
      $region46: #{tpu_custom_call.1} parent=5 // pred_check_branch
        %529 = sbr.rel (%p527) target = $region48
      $region47: #{tpu_custom_call.1} parent=5 // pred_region
        %s530 = ssub.s32 %s14, 2
        // Predicated region
        $region49: #{tpu_custom_call.1} parent=47 // pred_check
          %p531 = pneg %p153
        $region50: #{tpu_custom_call.1} parent=47 // pred_check_branch
          %533 = sbr.rel (%p531) target = $region52
        $region51: #{tpu_custom_call.1} parent=47 // pred_region
          %s534 = sand.u32 %s138, 1
          %s535 = scalar_lea.sflag [#allocation3], %s534
          %s536 = sand.u32 %s138, 1
          %s537 = smul.addr %s536, 8
          %s538 = scalar_lea.vmem [#allocation2], %s537
          %539 = dma.done %s535, 128
        $region52: #{tpu_custom_call.1} parent=47 // pred_fallthru
          _
      $region48: #{tpu_custom_call.1} parent=5 // pred_fallthru
        _
    $region6: #{tpu_custom_call.1} parent=1 // loop_footer
      %s18 = sadd.s32 1, %s14
    $region7: #{tpu_custom_call.1} parent=1 // loop_footer_branch
      %13 = sbr.rel target = $region3
    $region8: #{tpu_custom_call.1} parent=1 // loop_exit
      _
    %540 = vsyncpa [#allocation3], 1
    %s541 = scalar_lea.sflag [#allocation3], 1
    %542 = vsyncpa %s541, 1

</llo_original>
